<compile_context>
chip_gen: v7x
topology: tpu7x:2x2x1
jax: 0.10.0
libtpu: 0.0.40
codegen_flags: <defaults>
</compile_context>

<pallas_src>
import functools

import jax
import jax.numpy as jnp
from jax.experimental import pallas as pl
from jax.experimental.pallas import tpu as pltpu


def _add_bias_kernel(b_ref, x_ref, o_ref):
    # b_ref broadcasts against the x tile:
    #   2D path: (1, C)  -- per-lane bias, broadcast over sublanes (rows)
    #   4D path: (tm, 1) -- per-row bias, broadcast over lanes (H*W)
    o_ref[...] = x_ref[...] + b_ref[...]


def _pick_tm(M, row_bytes, max_rows):
    """Rows per block: ~2 MiB per x block, sublane-aligned, capped at max_rows."""
    budget_bytes = 2 << 20
    tm = max(8, min(max_rows, budget_bytes // max(row_bytes, 1)))
    if tm >= M:
        # Whole input fits one block.  If there is plenty of work and the
        # split is free (no ragged remainder), use two blocks so the
        # "parallel" grid axis can shard across v7x's two TensorCores.
        if M >= 1024 and M % 16 == 0:
            return M // 2
        return M
    return max(8, (tm // 8) * 8)


def _streamed_add(x2, bias2, bias_is_row, max_block_rows=2048):
    """out = x2 + bias2 (broadcast). x2: (M, L); bias2: (1, L) or (M, 1)."""
    M, L = x2.shape
    tm = _pick_tm(M, L * x2.dtype.itemsize, max_block_rows)
    n_blocks = pl.cdiv(M, tm)

    if bias_is_row:
        b_spec = pl.BlockSpec((1, L), lambda i: (0, 0))
    else:
        b_spec = pl.BlockSpec((tm, 1), lambda i: (i, 0))

    return pl.pallas_call(
        _add_bias_kernel,
        out_shape=jax.ShapeDtypeStruct((M, L), x2.dtype),
        grid_spec=pltpu.PrefetchScalarGridSpec(
            num_scalar_prefetch=0,
            grid=(n_blocks,),
            in_specs=[
                b_spec,                                     # bias (tiny, resident)
                pl.BlockSpec((tm, L), lambda i: (i, 0)),    # x tile
            ],
            out_specs=pl.BlockSpec((tm, L), lambda i: (i, 0)),
        ),
        compiler_params=pltpu.CompilerParams(
            dimension_semantics=("parallel",),
            vmem_limit_bytes=32 * 1024 * 1024,
        ),
    )(bias2, x2)


def lora_add_bias(x, w0, lora_A, lora_B, agent_id,
                  w0_scale, wd_scale, lora_alpha, r, *, max_block_rows=2048):
    """Forward of LoRA_AddBias.

    x:       (B, C) or (N, C, H, W) float32 (NCHW, like PyTorch)
    w0:      (C, 1)                       -- self._bias
    lora_A:  (num_agents, r, 1)
    lora_B:  (num_agents, C, r)
    w0_scale / wd_scale only affect gradients (straight-through); the forward
    value of the bias expression is exactly W0 + dW.
    """
    C = w0.shape[0]

    # Bias hoisted out of the per-tile kernel (perf review #1 / #7): a single
    # tiny (C, r) x (r, 1) product, computed once per call.
    dW = (lora_alpha / r) * (lora_B[agent_id] @ lora_A[agent_id])      # (C, 1)
    # TODO(synk): backward needs a custom_vjp to reproduce the W0_scale /
    # Wd_scale straight-through gradient scaling of the PyTorch module.
    bias = (w0 + dW).reshape(-1).astype(x.dtype)                       # (C,)

    if x.ndim == 2:
        # (B, C): channels on the lane axis, bias is a resident (1, C) row.
        return _streamed_add(x, bias.reshape(1, C), bias_is_row=True,
                             max_block_rows=max_block_rows)

    N, Cc, H, W = x.shape
    assert Cc == C
    # (N, C, H, W) viewed as (N*C, H*W): lane axis is dense (H*W) and there
    # are NO NCHW<->NHWC transposes (pure reshape = free view).  The bias
    # becomes a per-row column, one value per (n, c) row.
    x2 = x.reshape(N * C, H * W)
    bias_col = jnp.broadcast_to(bias[None, :], (N, C)).reshape(N * C, 1)
    out2 = _streamed_add(x2, bias_col, bias_is_row=False,
                         max_block_rows=max_block_rows)
    return out2.reshape(N, C, H, W)


def _reference(x, w0, lora_A, lora_B, agent_id, w0_scale, wd_scale, lora_alpha, r):
    dW = (lora_alpha / r) * (lora_B[agent_id] @ lora_A[agent_id])  # (C, 1)
    bias = w0_scale * w0 + (1 - w0_scale) * w0 + wd_scale * dW + (1 - wd_scale) * dW
    if x.ndim == 2:
        b = bias.T.reshape(1, -1)
    else:
        b = bias.T.reshape(1, -1, 1, 1)
    return x + b


if __name__ == "__main__":
    key = jax.random.PRNGKey(0)
    k_bias, k_A, k_B, k_x2, k_x4, k_x2r, k_x4r = jax.random.split(key, 7)

    # Module hyperparameters (deterministic synthetic init).
    C = 4             # len(bias)
    r = 2
    num_agents = 3
    lora_alpha = 4.0
    agent_id = 1
    w0_scale = 0.5    # MA_Linear.W0_scale
    wd_scale = 0.25   # MA_Linear.Wd_scale

    w0 = jax.random.normal(k_bias, (C, 1), dtype=jnp.float32)            # self._bias
    lora_A = jax.random.normal(k_A, (num_agents, r, 1), dtype=jnp.float32) * 0.1
    lora_B = jax.random.normal(k_B, (num_agents, C, r), dtype=jnp.float32) * 0.1

    # 2D input path: x of shape (batch, C)
    x2d = jax.random.normal(k_x2, (8, C), dtype=jnp.float32)
    # 4D input path: x of shape (N, C, H, W)  (PyTorch NCHW)
    x4d = jax.random.normal(k_x4, (2, C, 16, 16), dtype=jnp.float32)
    # Extra cases that force multi-block grids with ragged boundary blocks.
    x2d_r = jax.random.normal(k_x2r, (12, C), dtype=jnp.float32)
    x4d_r = jax.random.normal(k_x4r, (3, C, 16, 16), dtype=jnp.float32)

    fn = functools.partial(lora_add_bias, w0=w0, lora_A=lora_A, lora_B=lora_B,
                           agent_id=agent_id, w0_scale=w0_scale,
                           wd_scale=wd_scale, lora_alpha=lora_alpha, r=r)
    ref = functools.partial(_reference, w0=w0, lora_A=lora_A, lora_B=lora_B,
                            agent_id=agent_id, w0_scale=w0_scale,
                            wd_scale=wd_scale, lora_alpha=lora_alpha, r=r)

    out2d = jax.block_until_ready(fn(x2d))
    out4d = jax.block_until_ready(fn(x4d))
    out2d_r = jax.block_until_ready(fn(x2d_r, max_block_rows=8))   # 2 blocks, ragged
    out4d_r = jax.block_until_ready(fn(x4d_r, max_block_rows=8))   # 2 blocks, ragged

    assert out2d.shape == x2d.shape and out4d.shape == x4d.shape
    assert jnp.allclose(out2d, ref(x2d), atol=1e-5, rtol=1e-5)
    assert jnp.allclose(out4d, ref(x4d), atol=1e-5, rtol=1e-5)
    assert jnp.allclose(out2d_r, ref(x2d_r), atol=1e-5, rtol=1e-5)
    assert jnp.allclose(out4d_r, ref(x4d_r), atol=1e-5, rtol=1e-5)

    print("KERNEL_OK")
</pallas_src>

<mosaic_0001>
module attributes {stable_mosaic.version = 11 : i64} {
  func.func @_add_bias_kernel(%arg0: i32, %arg1: memref<1x4xf32, #tpu.memory_space<vmem>>, %arg2: memref<8x4xf32, #tpu.memory_space<vmem>>, %arg3: memref<8x4xf32, #tpu.memory_space<vmem>>) attributes {dimension_semantics = [#tpu.dimension_semantics<parallel>], iteration_bounds = array<i64: 1>, scalar_prefetch = 0 : i64, scratch_operands = 0 : i64, tpu.core_type = #tpu.core_type<tc>, window_params = [{pipeline_mode = #tpu.pipeline_mode<synchronous>, transform_indices = @transform_0, window_bounds = array<i64: 1, 4>}, {transform_indices = @transform_1, window_bounds = array<i64: 8, 4>}, {transform_indices = @transform_2, window_bounds = array<i64: 8, 4>}]} {
    %c0 = arith.constant 0 : index
    %c0_0 = arith.constant 0 : index
    %0 = vector.load %arg2[%c0, %c0_0] : memref<8x4xf32, #tpu.memory_space<vmem>>, vector<8x4xf32>
    %c0_1 = arith.constant 0 : index
    %c0_2 = arith.constant 0 : index
    %1 = vector.load %arg1[%c0_1, %c0_2] : memref<1x4xf32, #tpu.memory_space<vmem>>, vector<1x4xf32>
    %2 = vector.broadcast %1 : vector<1x4xf32> to vector<8x4xf32>
    %3 = arith.addf %0, %2 : vector<8x4xf32>
    %c0_3 = arith.constant 0 : index
    %c0_4 = arith.constant 0 : index
    %4 = vector.load %arg3[%c0_3, %c0_4] : memref<8x4xf32, #tpu.memory_space<vmem>>, vector<8x4xf32>
    tpu.vector_store %arg3[%c0_3, %c0_4], %3 {strides = array<i32>} : memref<8x4xf32, #tpu.memory_space<vmem>>, vector<8x4xf32>,
    return
  }
  func.func @transform_0(%arg0: i32) -> (i32, i32) {
    %c0_i32 = arith.constant 0 : i32
    %c0_i32_0 = arith.constant 0 : i32
    %c0_i32_1 = arith.constant 0 : i32
    return %c0_i32, %c0_i32_0 : i32, i32
  }
  func.func @transform_1(%arg0: i32) -> (i32, i32) {
    %c0_i32 = arith.constant 0 : i32
    %c0_i32_0 = arith.constant 0 : i32
    return %arg0, %c0_i32 : i32, i32
  }
  func.func @transform_2(%arg0: i32) -> (i32, i32) {
    %c0_i32 = arith.constant 0 : i32
    %c0_i32_0 = arith.constant 0 : i32
    return %arg0, %c0_i32 : i32, i32
  }
}

</mosaic_0001>

<llo_original>
// kernel: tpu_custom_call.1
$region0: #{tpu_custom_call.1}
  #allocation0 [shape = 'u32[]', space=smem, size = 0x4, offset = 0x4, fixed_abs, tag = 'smem constant byte address 0x4 - core index']
  #allocation1 [shape = 'u32[144,128]{1,0:T(1,128)}', space=vmem, size = 0x12000, scoped, tag = 'internal scratch']
  %s0 = inlined_call_operand.vmem [shape: f32[1,4], index: 0, kind: input, shape index: {}]
  %s1 = inlined_call_operand.vmem [shape: f32[8,4], index: 1, kind: input, shape index: {}]
  %s2 = inlined_call_operand.vmem [shape: f32[8,4], index: 2, kind: output, shape index: {}]
  %s3 = sld [smem:[#allocation0]]
  $region18: #{tpu_custom_call.1} parent=0
    _
  %s5 = ssub.s32 1, %s3
  %s6 = scalar_select 0, %s5, %s3
  // Predicated region
  $region2: #{tpu_custom_call.1} parent=0 // pred_check
    _
  $region3: #{tpu_custom_call.1} parent=0 // pred_check_branch
    %8 = sbr.rel (0) target = $region5
  $region4: #{tpu_custom_call.1} parent=0 // pred_region
    _
  $region5: #{tpu_custom_call.1} parent=0 // pred_fallthru
    _
  // Predicated region
  $region6: #{tpu_custom_call.1} parent=0 // pred_check
    _
  $region7: #{tpu_custom_call.1} parent=0 // pred_check_branch
    %10 = sbr.rel (0) target = $region9
  $region8: #{tpu_custom_call.1} parent=0 // pred_region
    _
  $region9: #{tpu_custom_call.1} parent=0 // pred_fallthru
    _
  %v11 = vld [vmem:[%s1] sm:$0xff]
  %v12 = vld [vmem:[%s0] sm:$0x1]
  %v14 = vlaneseq
  %v15 = vshrl.u32 %v14, 7
  %v16 = vsub.s32 0, %v15
  %v17 = vrot.slane %v12, %v16
  %v19 = vadd.f32 %v11, %v17
  %vm20 = vcmask 31744
  %21 = vst.msk [vmem:[%s2] sm:$0xff] %vm20, %v19
  // Predicated region
  $region10: #{tpu_custom_call.1} parent=0 // pred_check
    _
  $region11: #{tpu_custom_call.1} parent=0 // pred_check_branch
    %23 = sbr.rel (0) target = $region13
  $region12: #{tpu_custom_call.1} parent=0 // pred_region
    _
  $region13: #{tpu_custom_call.1} parent=0 // pred_fallthru
    _
  // Predicated region
  $region14: #{tpu_custom_call.1} parent=0 // pred_check
    _
  $region15: #{tpu_custom_call.1} parent=0 // pred_check_branch
    %25 = sbr.rel (0) target = $region17
  $region16: #{tpu_custom_call.1} parent=0 // pred_region
    _
  $region17: #{tpu_custom_call.1} parent=0 // pred_fallthru
    _

</llo_original>
